<compile_context>
chip_gen: v6e
topology: v6e:2x2x1
jax: 0.10.0
libtpu: 0.0.40
codegen_flags: <defaults>
</compile_context>

<pallas_src>
import functools

import jax
import jax.numpy as jnp
from jax.experimental import pallas as pl
from jax.experimental.pallas import tpu as pltpu

# Finite "-inf" sentinel.  NOTE: plain Python float (NOT jnp.float32(...)) so it is
# embedded as a literal — a module-level jnp scalar becomes a captured constant and
# pallas_call rejects the kernel ("captures constants [f32[]]").
_NEG = -1e30


def _gat_stats_kernel(dst_ref, z_ref, w_ref, stats_ref, sT_ref, m_sc, l_sc,
                      *, num_dst, num_heads):
    """Pass A: edge scores + online per-destination-node max/sum over edge tiles."""
    N, H = num_dst, num_heads
    i = pl.program_id(1)

    @pl.when(i == 0)
    def _init():
        m_sc[...] = jnp.full_like(m_sc, _NEG)
        l_sc[...] = jnp.zeros_like(l_sc)

    # One stacked MXU push: (H, 3D) @ (3D, TE) -> (H, TE), edges on lanes.
    s = jnp.dot(w_ref[...], z_ref[...], preferred_element_type=jnp.float32)
    s = jnp.where(s >= 0.0, s, 0.01 * s)                    # F.leaky_relu, slope 0.01

    dst = dst_ref[...]                                      # (1, TE) i32; pad id == N
    # Mask padded lanes to the finite sentinel BEFORE any exp so exp() on them is exactly
    # 0 (removes the 0*inf NaN hazard inside the one-hot matmul reductions), and persist
    # the masked scores for pass B (no re-streaming / recomputation of edge features).
    sT = jnp.where(dst < N, s, _NEG)                        # (H, TE)
    sT_ref[...] = sT

    te = sT.shape[1]
    row_iota = jax.lax.broadcasted_iota(jnp.int32, (N, te), 0)
    maskf = (row_iota == dst).astype(jnp.float32)           # (N, TE) one-hot, f32 gathers
    neg = (maskf - 1.0) * 1e30                              # additive mask: 0 match / -1e30

    m_old = m_sc[...]                                       # (N, H)
    l_old = l_sc[...]                                       # (N, H)

    # Per-head segment max within this tile: only 2-D (N, TE) temporaries, H unrolled.
    tile_max = jnp.concatenate(
        [jnp.max(sT[h:h + 1, :] + neg, axis=1, keepdims=True) for h in range(H)],
        axis=1)                                             # (N, H)
    m_new = jnp.maximum(m_old, tile_max)

    # Gather the updated per-node max back to the edges (exact one-hot matmul): (H, TE).
    m_eT = jax.lax.dot_general(m_new, maskf, (((0,), (0,)), ((), ())),
                               preferred_element_type=jnp.float32)
    eT = jnp.exp(sT - m_eT)                                 # (H, TE); padded lanes -> 0
    # Per-node partial sums of exp: (N, H).
    tile_sum = jax.lax.dot_general(maskf, eT, (((1,), (1,)), ((), ())),
                                   preferred_element_type=jnp.float32)

    # Online rescale (finite sentinel => no NaN when both maxes are still _NEG).
    m_sc[...] = m_new
    l_sc[...] = l_old * jnp.exp(m_old - m_new) + tile_sum

    # Single store of this core-split's [max | sum] slab at the last tile.
    @pl.when(i == pl.num_programs(1) - 1)
    def _flush():
        stats_ref[...] = jnp.concatenate([m_sc[...], l_sc[...]], axis=1)[None]


def _gat_norm_kernel(dst_ref, sT_ref, stats_ref, out_ref, *, num_dst, num_heads):
    """Pass B: softmax-normalize the stored scores + mean over heads (lane-dense out)."""
    N, H = num_dst, num_heads

    sT = sT_ref[...]                                        # (H, TE); padded lanes == _NEG
    te = sT.shape[1]
    dst = dst_ref[...]                                      # (1, TE)
    maskf = (jax.lax.broadcasted_iota(jnp.int32, (N, te), 0) == dst).astype(jnp.float32)

    # Single fused one-hot gather of [max | sum]: (2H, TE).
    gath = jax.lax.dot_general(stats_ref[...], maskf, (((0,), (0,)), ((), ())),
                               preferred_element_type=jnp.float32)
    m_eT = gath[0:H, :]
    l_eT = gath[H:2 * H, :]

    # EUP reciprocal instead of a VPU divide; head-mean as a constant scale.
    inv_l = pl.reciprocal(jnp.maximum(l_eT, 1e-30), approx=True)
    attnT = jnp.exp(sT - m_eT) * inv_l                      # padded lanes: exp(_NEG) == 0
    out_ref[...] = jnp.sum(attnT, axis=0, keepdims=True) * (1.0 / H)   # (1, TE)


def multi_head_gat(z_src, z_t, z_c, dst_ids, weights, num_dst, *,
                   tile_e=512, vmem_limit_bytes=None):
    """Forward pass of MultiHeadGATLayer (merge='mean'): per-edge attention (E, 1).

    Tuning notes (sweep tile_e per generation):
      * tile_e in 512..2048 amortizes the ~0.35 us/grid-step overhead and gives long
        unmasked lane-dense stores in pass B.
      * v5e/v6e (128 MiB VMEM, 1 TC): take the larger end; raise vmem_limit_bytes once
        blocks exceed the default scoped limit.
      * v7x (64 MiB VMEM, 2 TCs): keep n_tiles even and reasonably large so the
        'parallel' axes feed both cores; pass A is additionally split across cores via
        a leading size-2 'parallel' grid axis, partial stats merged wrapper-side.
    """
    E, D = z_src.shape
    H = weights.shape[0]
    assert weights.shape[1] == 3 * D
    assert tile_e % 128 == 0, "edge tile must be lane-aligned (multiple of 128)"

    # v7x: split pass A's reduction over both TensorCores when there is enough work.
    num_splits = 2 if E > tile_e else 1
    e_pad = pl.cdiv(E, num_splits * tile_e) * (num_splits * tile_e)
    pad = e_pad - E
    n_tiles = e_pad // tile_e
    tiles_per_split = n_tiles // num_splits

    # Single stacked (3D, E_pad) edge-feature slab: one pad + one transpose, one DMA
    # stream and one K=3D MXU push per tile (instead of three K=D pushes / streams).
    z_all = jnp.concatenate([z_src, z_t, z_c], axis=1)       # (E, 3D)
    if pad:
        z_all = jnp.pad(z_all, ((0, pad), (0, 0)))
    z_all_t = z_all.T                                        # (3D, E_pad)

    # Padded edges get dst id == num_dst, which matches no node (drops out of the mask).
    dst = jnp.pad(dst_ids.astype(jnp.int32), (0, pad),
                  constant_values=num_dst).reshape(1, e_pad)

    # TODO(synk): for large num_dst, sort edges by destination wrapper-side and drive the
    # tiling with PrefetchScalarGridSpec segment offsets instead of the (N, TE) one-hot.

    # ---- Pass A: per-core-split online [max | sum] + persisted scores --------------
    row_spec_a = pl.BlockSpec((1, tile_e), lambda c, i: (0, c * tiles_per_split + i))
    z_spec_a = pl.BlockSpec((3 * D, tile_e), lambda c, i: (0, c * tiles_per_split + i))
    w_spec_a = pl.BlockSpec((H, 3 * D), lambda c, i: (0, 0))
    stats_spec_a = pl.BlockSpec((1, num_dst, 2 * H), lambda c, i: (c, 0, 0))
    sT_spec_a = pl.BlockSpec((H, tile_e), lambda c, i: (0, c * tiles_per_split + i))

    stats_split, sT = pl.pallas_call(
        functools.partial(_gat_stats_kernel, num_dst=num_dst, num_heads=H),
        out_shape=(jax.ShapeDtypeStruct((num_splits, num_dst, 2 * H), jnp.float32),
                   jax.ShapeDtypeStruct((H, e_pad), jnp.float32)),
        grid=(num_splits, tiles_per_split),
        in_specs=[row_spec_a, z_spec_a, w_spec_a],
        out_specs=(stats_spec_a, sT_spec_a),
        scratch_shapes=[pltpu.VMEM((num_dst, H), jnp.float32),
                        pltpu.VMEM((num_dst, H), jnp.float32)],
        compiler_params=pltpu.CompilerParams(
            dimension_semantics=("parallel", "arbitrary"),
            vmem_limit_bytes=vmem_limit_bytes),
    )(dst, z_all_t, weights)

    # Merge the per-core partial [max | sum] stats (cheap wrapper-side epilogue).
    m_part = stats_split[:, :, :H]                           # (S, N, H)
    l_part = stats_split[:, :, H:]
    m = jnp.max(m_part, axis=0)                              # (N, H)
    l = jnp.sum(l_part * jnp.exp(m_part - m[None]), axis=0)  # (N, H)
    stats = jnp.concatenate([m, l], axis=1)                  # (N, 2H)

    # ---- Pass B: normalize + head-mean (independent per tile -> megacore-parallel) --
    row_spec_b = pl.BlockSpec((1, tile_e), lambda i: (0, i))
    sT_spec_b = pl.BlockSpec((H, tile_e), lambda i: (0, i))
    stats_spec_b = pl.BlockSpec((num_dst, 2 * H), lambda i: (0, 0))

    out_row = pl.pallas_call(
        functools.partial(_gat_norm_kernel, num_dst=num_dst, num_heads=H),
        out_shape=jax.ShapeDtypeStruct((1, e_pad), jnp.float32),
        grid=(n_tiles,),
        in_specs=[row_spec_b, sT_spec_b, stats_spec_b],
        out_specs=row_spec_b,
        compiler_params=pltpu.CompilerParams(
            dimension_semantics=("parallel",),
            vmem_limit_bytes=vmem_limit_bytes),
    )(dst, sT, stats)

    return out_row[0, :E].reshape(E, 1)


def _reference(z_src, z_t, z_c, dst_ids, weights, num_dst):
    x = jnp.concatenate([z_src, z_t, z_c], axis=1)           # (E, 3D)
    s = x @ weights.T                                        # (E, H)
    s = jnp.where(s >= 0, s, 0.01 * s)
    attn = jnp.zeros_like(s)
    for n in range(num_dst):
        m = (dst_ids == n)[:, None]
        sm = jnp.where(m, s, -jnp.inf)
        gmax = jnp.max(sm, axis=0, keepdims=True)
        gmax = jnp.where(jnp.isfinite(gmax), gmax, 0.0)
        e = jnp.where(m, jnp.exp(s - gmax), 0.0)
        denom = jnp.maximum(jnp.sum(e, axis=0, keepdims=True), 1e-30)
        attn = attn + jnp.where(m, e / denom, 0.0)
    return jnp.mean(attn, axis=1, keepdims=True)


if __name__ == "__main__":
    # Config 1: small demo shapes (single edge tile, single core-split).
    E, D, N_DST, H = 200, 16, 8, 4   # edges, input_dims, dst nodes, num_heads
    k = jax.random.split(jax.random.PRNGKey(0), 5)
    z_src = jax.random.normal(k[0], (E, D), dtype=jnp.float32)
    z_t = jax.random.normal(k[1], (E, D), dtype=jnp.float32)
    z_c = jax.random.normal(k[2], (E, D), dtype=jnp.float32)
    dst_ids = jax.random.randint(k[3], (E,), 0, N_DST, dtype=jnp.int32)
    # Per-head Linear(3D -> 1, bias=False), xavier_normal_ with gain=calc_gain('relu')
    std = (2.0 ** 0.5) * (2.0 / (3 * D + 1)) ** 0.5
    weights = std * jax.random.normal(k[4], (H, 3 * D), dtype=jnp.float32)

    out = jax.block_until_ready(multi_head_gat(z_src, z_t, z_c, dst_ids, weights, N_DST))
    ref = _reference(z_src, z_t, z_c, dst_ids, weights, N_DST)
    assert out.shape == (E, 1)
    assert jnp.allclose(out, ref, atol=1e-3, rtol=1e-3), float(jnp.max(jnp.abs(out - ref)))

    # Config 2: exercises the multi-tile online reduction + two-core-split (v7x) path.
    # (tile_e=128 here only to force many tiles at tiny E; real configs use 512-2048.)
    E2, D2, N2, H2 = 1200, 8, 12, 4
    k = jax.random.split(jax.random.PRNGKey(1), 5)
    z_src2 = jax.random.normal(k[0], (E2, D2), dtype=jnp.float32)
    z_t2 = jax.random.normal(k[1], (E2, D2), dtype=jnp.float32)
    z_c2 = jax.random.normal(k[2], (E2, D2), dtype=jnp.float32)
    dst2 = jax.random.randint(k[3], (E2,), 0, N2, dtype=jnp.int32)
    std2 = (2.0 ** 0.5) * (2.0 / (3 * D2 + 1)) ** 0.5
    w2 = std2 * jax.random.normal(k[4], (H2, 3 * D2), dtype=jnp.float32)

    out2 = jax.block_until_ready(
        multi_head_gat(z_src2, z_t2, z_c2, dst2, w2, N2, tile_e=128))
    ref2 = _reference(z_src2, z_t2, z_c2, dst2, w2, N2)
    assert out2.shape == (E2, 1)
    assert jnp.allclose(out2, ref2, atol=1e-3, rtol=1e-3), float(jnp.max(jnp.abs(out2 - ref2)))

    print("KERNEL_OK")
</pallas_src>

<mosaic_0001>
module attributes {stable_mosaic.version = 11 : i64} {
  func.func @_gat_stats_kernel(%arg0: i32, %arg1: i32, %arg2: memref<1x512xi32, #tpu.memory_space<vmem>>, %arg3: memref<48x512xf32, #tpu.memory_space<vmem>>, %arg4: memref<4x48xf32, #tpu.memory_space<vmem>>, %arg5: memref<1x8x8xf32, #tpu.memory_space<vmem>>, %arg6: memref<4x512xf32, #tpu.memory_space<vmem>>, %arg7: memref<8x4xf32, #tpu.memory_space<vmem>>, %arg8: memref<8x4xf32, #tpu.memory_space<vmem>>) attributes {dimension_semantics = [#tpu.dimension_semantics<parallel>, #tpu.dimension_semantics<arbitrary>], iteration_bounds = array<i64: 1, 1>, scalar_prefetch = 0 : i64, scratch_operands = 2 : i64, tpu.core_type = #tpu.core_type<tc>, window_params = [{transform_indices = @transform_0, window_bounds = array<i64: 1, 512>}, {transform_indices = @transform_1, window_bounds = array<i64: 48, 512>}, {pipeline_mode = #tpu.pipeline_mode<synchronous>, transform_indices = @transform_2, window_bounds = array<i64: 4, 48>}, {transform_indices = @transform_3, window_bounds = array<i64: 1, 8, 8>}, {transform_indices = @transform_4, window_bounds = array<i64: 4, 512>}]} {
    %c0_i32 = arith.constant 0 : i32
    %0 = arith.cmpi eq, %arg1, %c0_i32 : i32
    %1 = arith.extui %0 : i1 to i32
    %c0_i32_0 = arith.constant 0 : i32
    %2 = arith.cmpi ne, %1, %c0_i32_0 : i32
    scf.if %2 {
      %cst_29 = arith.constant -1.000000e+30 : f32
      %65 = vector.broadcast %cst_29 : f32 to vector<8x4xf32>
      %c0_30 = arith.constant 0 : index
      %c0_31 = arith.constant 0 : index
      %66 = vector.load %arg7[%c0_30, %c0_31] : memref<8x4xf32, #tpu.memory_space<vmem>>, vector<8x4xf32>
      tpu.vector_store %arg7[%c0_30, %c0_31], %65 {strides = array<i32>} : memref<8x4xf32, #tpu.memory_space<vmem>>, vector<8x4xf32>,
      %cst_32 = arith.constant 0.000000e+00 : f32
      %67 = vector.broadcast %cst_32 : f32 to vector<8x4xf32>
      %c0_33 = arith.constant 0 : index
      %c0_34 = arith.constant 0 : index
      %68 = vector.load %arg8[%c0_33, %c0_34] : memref<8x4xf32, #tpu.memory_space<vmem>>, vector<8x4xf32>
      tpu.vector_store %arg8[%c0_33, %c0_34], %67 {strides = array<i32>} : memref<8x4xf32, #tpu.memory_space<vmem>>, vector<8x4xf32>,
    } else {
    }
    %c0 = arith.constant 0 : index
    %c0_1 = arith.constant 0 : index
    %3 = vector.load %arg4[%c0, %c0_1] : memref<4x48xf32, #tpu.memory_space<vmem>>, vector<4x48xf32>
    %c0_2 = arith.constant 0 : index
    %c0_3 = arith.constant 0 : index
    %4 = vector.load %arg3[%c0_2, %c0_3] : memref<48x512xf32, #tpu.memory_space<vmem>>, vector<48x512xf32>
    %cst = arith.constant dense<0.000000e+00> : vector<4x512xf32>
    %5 = tpu.matmul %3, %4, %cst {dimension_numbers = #tpu.dot_dimension_numbers<[1], [0], [0], [1], [0, 0, 1, 1], [], []>} : vector<4x48xf32>, vector<48x512xf32>, vector<4x512xf32> -> vector<4x512xf32>
    %cst_4 = arith.constant 0.000000e+00 : f32
    %6 = vector.broadcast %cst_4 : f32 to vector<4x512xf32>
    %7 = arith.cmpf oge, %5, %6 : vector<4x512xf32>
    %cst_5 = arith.constant 0.00999999977 : f32
    %8 = vector.broadcast %cst_5 : f32 to vector<4x512xf32>
    %9 = arith.mulf %8, %5 : vector<4x512xf32>
    %10 = arith.select %7, %5, %9 : vector<4x512xi1>, vector<4x512xf32>
    %c0_6 = arith.constant 0 : index
    %c0_7 = arith.constant 0 : index
    %11 = vector.load %arg2[%c0_6, %c0_7] : memref<1x512xi32, #tpu.memory_space<vmem>>, vector<1x512xi32>
    %c8_i32 = arith.constant 8 : i32
    %12 = vector.broadcast %c8_i32 : i32 to vector<1x512xi32>
    %13 = arith.cmpi slt, %11, %12 : vector<1x512xi32>
    %cst_8 = arith.constant -1.000000e+30 : f32
    %14 = vector.shape_cast %13 : vector<1x512xi1> to vector<1x512xi1>
    %15 = vector.broadcast %14 : vector<1x512xi1> to vector<4x512xi1>
    %16 = vector.broadcast %cst_8 : f32 to vector<4x512xf32>
    %17 = arith.select %15, %10, %16 : vector<4x512xi1>, vector<4x512xf32>
    %c0_9 = arith.constant 0 : index
    %c0_10 = arith.constant 0 : index
    %18 = vector.load %arg6[%c0_9, %c0_10] : memref<4x512xf32, #tpu.memory_space<vmem>>, vector<4x512xf32>
    tpu.vector_store %arg6[%c0_9, %c0_10], %17 {strides = array<i32>} : memref<4x512xf32, #tpu.memory_space<vmem>>, vector<4x512xf32>,
    %19 = tpu.iota {dimensions = array<i32: 0>} : vector<8x512xi32>
    %20 = vector.broadcast %11 : vector<1x512xi32> to vector<8x512xi32>
    %21 = arith.cmpi eq, %19, %20 : vector<8x512xi32>
    %22 = arith.extui %21 : vector<8x512xi1> to vector<8x512xi32>
    %23 = arith.sitofp %22 : vector<8x512xi32> to vector<8x512xf32>
    %cst_11 = arith.constant 1.000000e+00 : f32
    %24 = vector.broadcast %cst_11 : f32 to vector<8x512xf32>
    %25 = arith.subf %23, %24 : vector<8x512xf32>
    %cst_12 = arith.constant 1.000000e+30 : f32
    %26 = vector.broadcast %cst_12 : f32 to vector<8x512xf32>
    %27 = arith.mulf %25, %26 : vector<8x512xf32>
    %c0_13 = arith.constant 0 : index
    %c0_14 = arith.constant 0 : index
    %28 = vector.load %arg7[%c0_13, %c0_14] : memref<8x4xf32, #tpu.memory_space<vmem>>, vector<8x4xf32>
    %c0_15 = arith.constant 0 : index
    %c0_16 = arith.constant 0 : index
    %29 = vector.load %arg8[%c0_15, %c0_16] : memref<8x4xf32, #tpu.memory_space<vmem>>, vector<8x4xf32>
    %30 = vector.extract_strided_slice %17 {offsets = [0, 0], sizes = [1, 512], strides = [1, 1]} : vector<4x512xf32> to vector<1x512xf32>
    %31 = vector.broadcast %30 : vector<1x512xf32> to vector<8x512xf32>
    %32 = arith.addf %31, %27 : vector<8x512xf32>
    %cst_17 = arith.constant dense<0xFF800000> : vector<8xf32>
    %33 = vector.multi_reduction <maximumf>, %32, %cst_17 [1] : vector<8x512xf32> to vector<8xf32>
    %34 = vector.shape_cast %33 : vector<8xf32> to vector<8x1xf32>
    %35 = vector.extract_strided_slice %17 {offsets = [1, 0], sizes = [1, 512], strides = [1, 1]} : vector<4x512xf32> to vector<1x512xf32>
    %36 = vector.broadcast %35 : vector<1x512xf32> to vector<8x512xf32>
    %37 = arith.addf %36, %27 : vector<8x512xf32>
    %cst_18 = arith.constant dense<0xFF800000> : vector<8xf32>
    %38 = vector.multi_reduction <maximumf>, %37, %cst_18 [1] : vector<8x512xf32> to vector<8xf32>
    %39 = vector.shape_cast %38 : vector<8xf32> to vector<8x1xf32>
    %40 = vector.extract_strided_slice %17 {offsets = [2, 0], sizes = [1, 512], strides = [1, 1]} : vector<4x512xf32> to vector<1x512xf32>
    %41 = vector.broadcast %40 : vector<1x512xf32> to vector<8x512xf32>
    %42 = arith.addf %41, %27 : vector<8x512xf32>
    %cst_19 = arith.constant dense<0xFF800000> : vector<8xf32>
    %43 = vector.multi_reduction <maximumf>, %42, %cst_19 [1] : vector<8x512xf32> to vector<8xf32>
    %44 = vector.shape_cast %43 : vector<8xf32> to vector<8x1xf32>
    %45 = vector.extract_strided_slice %17 {offsets = [3, 0], sizes = [1, 512], strides = [1, 1]} : vector<4x512xf32> to vector<1x512xf32>
    %46 = vector.broadcast %45 : vector<1x512xf32> to vector<8x512xf32>
    %47 = arith.addf %46, %27 : vector<8x512xf32>
    %cst_20 = arith.constant dense<0xFF800000> : vector<8xf32>
    %48 = vector.multi_reduction <maximumf>, %47, %cst_20 [1] : vector<8x512xf32> to vector<8xf32>
    %49 = vector.shape_cast %48 : vector<8xf32> to vector<8x1xf32>
    %50 = tpu.concatenate %34, %39, %44, %49 in 1 : vector<8x1xf32>, vector<8x1xf32>, vector<8x1xf32>, vector<8x1xf32> -> vector<8x4xf32>
    %51 = arith.maximumf %28, %50 : vector<8x4xf32>
    %cst_21 = arith.constant dense<0.000000e+00> : vector<4x512xf32>
    %52 = tpu.matmul %51, %23, %cst_21 {dimension_numbers = #tpu.dot_dimension_numbers<[0], [0], [1], [1], [0, 1, 1, 1], [], []>} : vector<8x4xf32>, vector<8x512xf32>, vector<4x512xf32> -> vector<4x512xf32>
    %53 = arith.subf %17, %52 : vector<4x512xf32>
    %54 = math.exp %53 : vector<4x512xf32>
    %cst_22 = arith.constant dense<0.000000e+00> : vector<8x4xf32>
    %55 = tpu.matmul %23, %54, %cst_22 {dimension_numbers = #tpu.dot_dimension_numbers<[1], [1], [0], [0], [0, 0, 1, 0], [], []>} : vector<8x512xf32>, vector<4x512xf32>, vector<8x4xf32> -> vector<8x4xf32>
    %c0_23 = arith.constant 0 : index
    %c0_24 = arith.constant 0 : index
    %56 = vector.load %arg7[%c0_23, %c0_24] : memref<8x4xf32, #tpu.memory_space<vmem>>, vector<8x4xf32>
    tpu.vector_store %arg7[%c0_23, %c0_24], %51 {strides = array<i32>} : memref<8x4xf32, #tpu.memory_space<vmem>>, vector<8x4xf32>,
    %57 = arith.subf %28, %51 : vector<8x4xf32>
    %58 = math.exp %57 : vector<8x4xf32>
    %59 = arith.mulf %29, %58 : vector<8x4xf32>
    %60 = arith.addf %59, %55 : vector<8x4xf32>
    %c0_25 = arith.constant 0 : index
    %c0_26 = arith.constant 0 : index
    %61 = vector.load %arg8[%c0_25, %c0_26] : memref<8x4xf32, #tpu.memory_space<vmem>>, vector<8x4xf32>
    tpu.vector_store %arg8[%c0_25, %c0_26], %60 {strides = array<i32>} : memref<8x4xf32, #tpu.memory_space<vmem>>, vector<8x4xf32>,
    %c0_i32_27 = arith.constant 0 : i32
    %62 = arith.cmpi eq, %arg1, %c0_i32_27 : i32
    %63 = arith.extui %62 : i1 to i32
    %c0_i32_28 = arith.constant 0 : i32
    %64 = arith.cmpi ne, %63, %c0_i32_28 : i32
    scf.if %64 {
      %c0_29 = arith.constant 0 : index
      %c0_30 = arith.constant 0 : index
      %65 = vector.load %arg7[%c0_29, %c0_30] : memref<8x4xf32, #tpu.memory_space<vmem>>, vector<8x4xf32>
      %c0_31 = arith.constant 0 : index
      %c0_32 = arith.constant 0 : index
      %66 = vector.load %arg8[%c0_31, %c0_32] : memref<8x4xf32, #tpu.memory_space<vmem>>, vector<8x4xf32>
      %67 = tpu.concatenate %65, %66 in 1 : vector<8x4xf32>, vector<8x4xf32> -> vector<8x8xf32>
      %68 = vector.shape_cast %67 : vector<8x8xf32> to vector<1x8x8xf32>
      %c0_33 = arith.constant 0 : index
      %c0_34 = arith.constant 0 : index
      %c0_35 = arith.constant 0 : index
      %69 = vector.load %arg5[%c0_33, %c0_34, %c0_35] : memref<1x8x8xf32, #tpu.memory_space<vmem>>, vector<1x8x8xf32>
      tpu.vector_store %arg5[%c0_33, %c0_34, %c0_35], %68 {strides = array<i32>} : memref<1x8x8xf32, #tpu.memory_space<vmem>>, vector<1x8x8xf32>,
    } else {
    }
    return
  }
  func.func @transform_0(%arg0: i32, %arg1: i32) -> (i32, i32) {
    %c1_i32 = arith.constant 1 : i32
    %0 = arith.muli %arg0, %c1_i32 : i32
    %1 = arith.addi %0, %arg1 : i32
    %c0_i32 = arith.constant 0 : i32
    %c0_i32_0 = arith.constant 0 : i32
    return %c0_i32, %1 : i32, i32
  }
  func.func @transform_1(%arg0: i32, %arg1: i32) -> (i32, i32) {
    %c1_i32 = arith.constant 1 : i32
    %0 = arith.muli %arg0, %c1_i32 : i32
    %1 = arith.addi %0, %arg1 : i32
    %c0_i32 = arith.constant 0 : i32
    %c0_i32_0 = arith.constant 0 : i32
    return %c0_i32, %1 : i32, i32
  }
  func.func @transform_2(%arg0: i32, %arg1: i32) -> (i32, i32) {
    %c0_i32 = arith.constant 0 : i32
    %c0_i32_0 = arith.constant 0 : i32
    %c0_i32_1 = arith.constant 0 : i32
    return %c0_i32, %c0_i32_0 : i32, i32
  }
  func.func @transform_3(%arg0: i32, %arg1: i32) -> (i32, i32, i32) {
    %c0_i32 = arith.constant 0 : i32
    %c0_i32_0 = arith.constant 0 : i32
    %c0_i32_1 = arith.constant 0 : i32
    return %arg0, %c0_i32, %c0_i32_0 : i32, i32, i32
  }
  func.func @transform_4(%arg0: i32, %arg1: i32) -> (i32, i32) {
    %c1_i32 = arith.constant 1 : i32
    %0 = arith.muli %arg0, %c1_i32 : i32
    %1 = arith.addi %0, %arg1 : i32
    %c0_i32 = arith.constant 0 : i32
    %c0_i32_0 = arith.constant 0 : i32
    return %c0_i32, %1 : i32, i32
  }
}

</mosaic_0001>

<llo_original>
// kernel: tpu_custom_call.1
$region0: #{tpu_custom_call.1}
  #allocation0 [shape = 'u32[]', space=smem, size = 0x4, offset = 0x4, fixed_abs, tag = 'smem constant byte address 0x4 - core index']
  #allocation1 [shape = 'u32[144,128]{1,0:T(1,128)}', space=vmem, size = 0x12000, scoped, tag = 'internal scratch']
  #allocation2 [shape = 'f32[8,4]{1,0:T(8,128)}', space=vmem, size = 0x1000, scoped, tag = 'scratch operand']
  #allocation3 [shape = 'f32[8,4]{1,0:T(8,128)}', space=vmem, size = 0x1000, scoped, tag = 'scratch operand']
  %s0 = inlined_call_operand.hbm [shape: s32[1,512], index: 0, kind: input, shape index: {}]
  %s1 = inlined_call_operand.hbm [shape: f32[48,512], index: 1, kind: input, shape index: {}]
  %s2 = inlined_call_operand.hbm [shape: f32[4,48], index: 2, kind: input, shape index: {}]
  %s3 = inlined_call_operand.hbm [shape: f32[1,8,8], index: 3, kind: output, shape index: {0}]
  %s4 = inlined_call_operand.hbm [shape: f32[4,512], index: 4, kind: output, shape index: {1}]
  %5 = xla_tuple %s3, %s4
  %s6 = sld [smem:[#allocation0]]
  $region50: #{tpu_custom_call.1} parent=0
    _
  %s8 = ssub.s32 1, %s6
  %s9 = scalar_select 0, %s8, %s6
  $region1: #{tpu_custom_call.1} parent=0
    #allocation4 [shape = 'u8[2048]{0}', space=vmem, size = 0x800, scoped, tag = 'input window, operand 0, single buffered']
    #allocation5 [shape = 's32[1]{0}', space=sflag, size = 0x4, scoped, tag = 'scoped memory for tpu_custom_call.1']
    #allocation6 [shape = 's32[1]{0}', space=sflag, size = 0x4, scoped, tag = 'scoped memory for tpu_custom_call.1']
    #allocation7 [shape = 'u8[98304]{0}', space=vmem, size = 0x18000, scoped, tag = 'input window, operand 1, single buffered']
    #allocation8 [shape = 's32[1]{0}', space=sflag, size = 0x4, scoped, tag = 'scoped memory for tpu_custom_call.1']
    #allocation9 [shape = 'u8[2048]{0}', space=vmem, size = 0x800, scoped, tag = 'input window, operand 2, single buffered']
    #allocation10 [shape = 'u8[4096]{0}', space=vmem, size = 0x1000, scoped, tag = 'output window, operand 0, single buffered']
    #allocation11 [shape = 'u8[8192]{0}', space=vmem, size = 0x2000, scoped, tag = 'output window, operand 1, single buffered']
    #allocation12 [shape = 's32[1]{0}', space=sflag, size = 0x4, scoped, tag = 'scoped memory for tpu_custom_call.1']
    %10 = vsyncpa [#allocation5], 0
    %11 = vsyncpa [#allocation8], 0
    %12 = vsyncpa [#allocation6], 0
    %13 = vsyncpa [#allocation12], 0
    // Predicated region
    $region2: #{tpu_custom_call.1} parent=1 // pred_check
      _
    $region3: #{tpu_custom_call.1} parent=1 // pred_check_branch
      %15 = sbr.rel (0) target = $region5
    $region4: #{tpu_custom_call.1} parent=1 // pred_region
      %s16 = sadd.s32 0, 0
      %s17 = smul.u32 4, %s16
      %s19 = ssub.s32 64, 64
      %20 = vsyncadd [#allocation5], %s19
      %s21 = smul.addr %s17, 16
      %s22 = scalar_lea.hbm %s0, %s21
      %s24 = sshll.u32 [#allocation4], 4
      %s25 = int_to_ptr.vmem [resolvable:$true] %s24
      %27 = dma.hbm_to_vmem [thread:$0]  %s22, 64, %s25, [#allocation5]
    $region5: #{tpu_custom_call.1} parent=1 // pred_fallthru
      _
    // Predicated region
    $region6: #{tpu_custom_call.1} parent=1 // pred_check
      _
    $region7: #{tpu_custom_call.1} parent=1 // pred_check_branch
      %29 = sbr.rel (0) target = $region9
    $region8: #{tpu_custom_call.1} parent=1 // pred_region
      %s30 = sadd.s32 0, 0
      %s31 = smul.u32 4, %s30
      %s33 = ssub.s32 3072, 3072
      %34 = vsyncadd [#allocation8], %s33
      %s35 = smul.addr %s31, 128
      %s36 = scalar_lea.hbm %s1, %s35
      %s37 = sshll.u32 [#allocation7], 4
      %s38 = int_to_ptr.vmem [resolvable:$true] %s37
      %43 = dma.hbm_to_vmem [thread:$0]  %s36, 3072, %s38, [#allocation8], 512, 512, 32
    $region9: #{tpu_custom_call.1} parent=1 // pred_fallthru
      _
    // Predicated region
    $region10: #{tpu_custom_call.1} parent=1 // pred_check
      _
    $region11: #{tpu_custom_call.1} parent=1 // pred_check_branch
      %45 = sbr.rel (0) target = $region13
    $region12: #{tpu_custom_call.1} parent=1 // pred_region
      %s47 = ssub.s32 64, 64
      %48 = vsyncadd [#allocation8], %s47
      %s50 = sshll.u32 [#allocation9], 4
      %s51 = int_to_ptr.vmem [resolvable:$true] %s50
      %53 = dma.hbm_to_vmem [thread:$0]  %s2, 64, %s51, [#allocation8]
    $region13: #{tpu_custom_call.1} parent=1 // pred_fallthru
      _
    // Predicated region
    $region14: #{tpu_custom_call.1} parent=1 // pred_check
      _
    $region15: #{tpu_custom_call.1} parent=1 // pred_check_branch
      %55 = sbr.rel (0) target = $region17
    $region16: #{tpu_custom_call.1} parent=1 // pred_region
      %56 = dma.done [#allocation5], 64
    $region17: #{tpu_custom_call.1} parent=1 // pred_fallthru
      _
    // Predicated region
    $region18: #{tpu_custom_call.1} parent=1 // pred_check
      _
    $region19: #{tpu_custom_call.1} parent=1 // pred_check_branch
      %58 = sbr.rel (0) target = $region21
    $region20: #{tpu_custom_call.1} parent=1 // pred_region
      %59 = dma.done [#allocation8], 3072
    $region21: #{tpu_custom_call.1} parent=1 // pred_fallthru
      _
    // Predicated region
    $region22: #{tpu_custom_call.1} parent=1 // pred_check
      _
    $region23: #{tpu_custom_call.1} parent=1 // pred_check_branch
      %61 = sbr.rel (0) target = $region25
    $region24: #{tpu_custom_call.1} parent=1 // pred_region
      %62 = dma.done [#allocation8], 64
    $region25: #{tpu_custom_call.1} parent=1 // pred_fallthru
      _
    %s63 = sadd.s32 0, 0
    %s64 = smul.u32 4, %s63
    %s65 = sadd.s32 0, 0
    %s66 = smul.u32 4, %s65
    %s67 = sadd.s32 0, 0
    %s68 = smul.u32 4, %s67
    %p69 = scmp.eq.s32.totalorder 0, 0
    // Predicated region
    $region26: #{tpu_custom_call.1} parent=1 // pred_check
      %p70 = pneg %p69
    $region27: #{tpu_custom_call.1} parent=1 // pred_check_branch
      %72 = sbr.rel (%p70) target = $region29
    $region28: #{tpu_custom_call.1} parent=1 // pred_region
      %vm73 = vcmask 31744
      %74 = vst.msk [vmem:[#allocation2] sm:$0xff] %vm73, -1e+30
      %75 = vst.msk [vmem:[#allocation3] sm:$0xff] %vm73, 0.0
    $region29: #{tpu_custom_call.1} parent=1 // pred_fallthru
      _
    %v76 = vld [vmem:[#allocation9] sm:$0xf]
    %v77 = vld [vmem:[#allocation7] sm:$0xff]
    %v78 = vld [vmem:[#allocation7 + $0x8] sm:$0xff]
    %v79 = vld [vmem:[#allocation7 + $0x10] sm:$0xff]
    %v80 = vld [vmem:[#allocation7 + $0x18] sm:$0xff]
    %v81 = vld [vmem:[#allocation7 + $0x20] sm:$0xff]
    %v82 = vld [vmem:[#allocation7 + $0x28] sm:$0xff]
    %v83 = vld [vmem:[#allocation7 + $0x30] sm:$0xff]
    %v84 = vld [vmem:[#allocation7 + $0x38] sm:$0xff]
    %v85 = vld [vmem:[#allocation7 + $0x40] sm:$0xff]
    %v86 = vld [vmem:[#allocation7 + $0x48] sm:$0xff]
    %v87 = vld [vmem:[#allocation7 + $0x50] sm:$0xff]
    %v88 = vld [vmem:[#allocation7 + $0x58] sm:$0xff]
    %v89 = vld [vmem:[#allocation7 + $0x60] sm:$0xff]
    %v90 = vld [vmem:[#allocation7 + $0x68] sm:$0xff]
    %v91 = vld [vmem:[#allocation7 + $0x70] sm:$0xff]
    %v92 = vld [vmem:[#allocation7 + $0x78] sm:$0xff]
    %v93 = vld [vmem:[#allocation7 + $0x80] sm:$0xff]
    %v94 = vld [vmem:[#allocation7 + $0x88] sm:$0xff]
    %v95 = vld [vmem:[#allocation7 + $0x90] sm:$0xff]
    %v96 = vld [vmem:[#allocation7 + $0x98] sm:$0xff]
    %v97 = vld [vmem:[#allocation7 + $0xa0] sm:$0xff]
    %v98 = vld [vmem:[#allocation7 + $0xa8] sm:$0xff]
    %v99 = vld [vmem:[#allocation7 + $0xb0] sm:$0xff]
    %v100 = vld [vmem:[#allocation7 + $0xb8] sm:$0xff]
    %vm101 = vcmask 392192
    %v103 = vsel %vm101, %v76, 0
    %105 = vmatprep.subr.mxu0 0.0
    %106 = vmatpush1.msra.mxu0 0.0
    %107 = vmatprep.subr.mxu0 0.0
    %108 = vmatpush1.msra.mxu0 0.0
    %109 = vmatprep.subr.mxu0 0.0
    %110 = vmatpush1.msra.mxu0 0.0
    %111 = vmatprep.subr.mxu0 0.0
    %112 = vmatpush1.msra.mxu0 0.0
    %113 = vmatprep.subr.mxu0 0.0
    %114 = vmatpush1.msra.mxu0 0.0
    %115 = vmatprep.subr.mxu0 0.0
    %116 = vmatpush1.msra.mxu0 0.0
    %117 = vmatprep.subr.mxu0 0.0
    %118 = vmatpush1.msra.mxu0 0.0
    %119 = vmatprep.subr.mxu0 0.0
    %120 = vmatpush1.msra.mxu0 0.0
    %121 = vmatprep.subr.mxu0 0.0
    %122 = vmatpush1.msra.mxu0 0.0
    %123 = vmatprep.subr.mxu0 0.0
    %124 = vmatpush1.msra.mxu0 0.0
    %125 = vmatprep.subr.mxu0 %v98
    %126 = vmatpush1.msra.mxu0 %v97
    %127 = vmatprep.subr.mxu0 %v94
    %128 = vmatpush1.msra.mxu0 %v93
    %129 = vmatprep.subr.mxu0 %v90
    %130 = vmatpush1.msra.mxu0 %v89
    %131 = vmatprep.subr.mxu0 %v86
    %132 = vmatpush1.msra.mxu0 %v85
    %133 = vmatprep.subr.mxu0 %v82
    %134 = vmatpush1.msra.mxu0 %v81
    %135 = vmatprep.subr.mxu0 %v78
    %136 = vmatpush1.msra.mxu0 %v77
    %137 = vmatprep.subr.mxu0 0.0
    %138 = vmatpush2.msra.mxu0 0.0
    %139 = vmatprep.subr.mxu0 0.0
    %140 = vmatpush2.msra.mxu0 0.0
    %141 = vmatprep.subr.mxu0 0.0
    %142 = vmatpush2.msra.mxu0 0.0
    %143 = vmatprep.subr.mxu0 0.0
    %144 = vmatpush2.msra.mxu0 0.0
    %145 = vmatprep.subr.mxu0 0.0
    %146 = vmatpush2.msra.mxu0 0.0
    %147 = vmatprep.subr.mxu0 0.0
    %148 = vmatpush2.msra.mxu0 0.0
    %149 = vmatprep.subr.mxu0 0.0
    %150 = vmatpush2.msra.mxu0 0.0
    %151 = vmatprep.subr.mxu0 0.0
    %152 = vmatpush2.msra.mxu0 0.0
    %153 = vmatprep.subr.mxu0 0.0
    %154 = vmatpush2.msra.mxu0 0.0
    %155 = vmatprep.subr.mxu0 0.0
    %156 = vmatpush2.msra.mxu0 0.0
    %157 = vmatprep.subr.mxu0 0.0
    %158 = vmatpush2.msra.mxu0 0.0
    %159 = vmatprep.subr.mxu0 0.0
    %160 = vmatpush2.msra.mxu0 0.0
    %161 = vmatprep.subr.mxu0 0.0
    %162 = vmatpush2.msra.mxu0 0.0
    %163 = vmatprep.subr.mxu0 0.0
    %164 = vmatpush2.msra.mxu0 0.0
    %165 = vmatprep.subr.mxu0 0.0
    %166 = vmatpush2.msra.mxu0 0.0
    %167 = vmatprep.subr.mxu0 0.0
    %168 = vmatpush2.msra.mxu0 0.0
    %169 = vmatprep.mubr.f32.mxu0 0.0
    %170 = vmatmul.mubr.f32.gmra.mxu0 %v103
    %v171 = vpop.f32.mrf.mxu0
    %v172 = vadd.f32 0.0, %v171
    %v173 = vpop.f32.mrf.mxu0
    %v174 = vadd.f32 0.0, %v173
    %175 = vdwg.mxu0
    %176 = vmatprep.subr.mxu0 0.0
    %177 = vmatpush1.msra.mxu0 0.0
    %178 = vmatprep.subr.mxu0 0.0
    %179 = vmatpush1.msra.mxu0 0.0
    %180 = vmatprep.subr.mxu0 0.0
    %181 = vmatpush1.msra.mxu0 0.0
    %182 = vmatprep.subr.mxu0 0.0
    %183 = vmatpush1.msra.mxu0 0.0
    %184 = vmatprep.subr.mxu0 0.0
    %185 = vmatpush1.msra.mxu0 0.0
    %186 = vmatprep.subr.mxu0 0.0
    %187 = vmatpush1.msra.mxu0 0.0
    %188 = vmatprep.subr.mxu0 0.0
    %189 = vmatpush1.msra.mxu0 0.0
    %190 = vmatprep.subr.mxu0 0.0
    %191 = vmatpush1.msra.mxu0 0.0
    %192 = vmatprep.subr.mxu0 0.0
    %193 = vmatpush1.msra.mxu0 0.0
    %194 = vmatprep.subr.mxu0 0.0
    %195 = vmatpush1.msra.mxu0 0.0
    %196 = vmatprep.subr.mxu0 %v100
    %197 = vmatpush1.msra.mxu0 %v99
    %198 = vmatprep.subr.mxu0 %v96
    %199 = vmatpush1.msra.mxu0 %v95
    %200 = vmatprep.subr.mxu0 %v92
    %201 = vmatpush1.msra.mxu0 %v91
    %202 = vmatprep.subr.mxu0 %v88
    %203 = vmatpush1.msra.mxu0 %v87
    %204 = vmatprep.subr.mxu0 %v84
    %205 = vmatpush1.msra.mxu0 %v83
    %206 = vmatprep.subr.mxu0 %v80
    %207 = vmatpush1.msra.mxu0 %v79
    %208 = vmatprep.subr.mxu0 0.0
    %209 = vmatpush2.msra.mxu0 0.0
    %210 = vmatprep.subr.mxu0 0.0
    %211 = vmatpush2.msra.mxu0 0.0
    %212 = vmatprep.subr.mxu0 0.0
    %213 = vmatpush2.msra.mxu0 0.0
    %214 = vmatprep.subr.mxu0 0.0
    %215 = vmatpush2.msra.mxu0 0.0
    %216 = vmatprep.subr.mxu0 0.0
    %217 = vmatpush2.msra.mxu0 0.0
    %218 = vmatprep.subr.mxu0 0.0
    %219 = vmatpush2.msra.mxu0 0.0
    %220 = vmatprep.subr.mxu0 0.0
    %221 = vmatpush2.msra.mxu0 0.0
    %222 = vmatprep.subr.mxu0 0.0
    %223 = vmatpush2.msra.mxu0 0.0
    %224 = vmatprep.subr.mxu0 0.0
    %225 = vmatpush2.msra.mxu0 0.0
    %226 = vmatprep.subr.mxu0 0.0
    %227 = vmatpush2.msra.mxu0 0.0
    %228 = vmatprep.subr.mxu0 0.0
    %229 = vmatpush2.msra.mxu0 0.0
    %230 = vmatprep.subr.mxu0 0.0
    %231 = vmatpush2.msra.mxu0 0.0
    %232 = vmatprep.subr.mxu0 0.0
    %233 = vmatpush2.msra.mxu0 0.0
    %234 = vmatprep.subr.mxu0 0.0
    %235 = vmatpush2.msra.mxu0 0.0
    %236 = vmatprep.subr.mxu0 0.0
    %237 = vmatpush2.msra.mxu0 0.0
    %238 = vmatprep.subr.mxu0 0.0
    %239 = vmatpush2.msra.mxu0 0.0
    %240 = vmatprep.mubr.f32.mxu0 0.0
    %241 = vmatmul.mubr.f32.gmra.mxu0 %v103
    %v242 = vpop.f32.mrf.mxu0
    %v243 = vadd.f32 0.0, %v242
    %v244 = vpop.f32.mrf.mxu0
    %v245 = vadd.f32 0.0, %v244
    %246 = vdwg.mxu0
    %vm247 = vcmp.ge.f32.partialorder %v172, 0.0
    %vm248 = vcmp.ge.f32.partialorder %v174, 0.0
    %vm249 = vcmp.ge.f32.partialorder %v243, 0.0
    %vm250 = vcmp.ge.f32.partialorder %v245, 0.0
    %v251 = vmul.f32 %v172, 0.01
    %v252 = vmul.f32 %v174, 0.01
    %v253 = vmul.f32 %v243, 0.01
    %v254 = vmul.f32 %v245, 0.01
    %v255 = vsel %vm247, %v172, %v251
    %v256 = vsel %vm248, %v174, %v252
    %v257 = vsel %vm249, %v243, %v253
    %v258 = vsel %vm250, %v245, %v254
    %v259 = vld [vmem:[#allocation4] sm:$0xf]
    %vm260 = vcmp.lt.s32.totalorder %v259, 8
    %v261 = vsel %vm260, 1, 0
    %v262 = vlaneseq
    %v263 = vshrl.u32 %v262, 7
    %v264 = vsub.s32 0, %v263
    %v265 = vrot.slane %v261, %v264
    %v266 = vlaneseq
    %v267 = vshrl.u32 %v266, 7
    %v268 = vsub.s32 1, %v267
    %v269 = vrot.slane %v261, %v268
    %v270 = vlaneseq
    %v271 = vshrl.u32 %v270, 7
    %v272 = vsub.s32 2, %v271
    %v273 = vrot.slane %v261, %v272
    %v274 = vlaneseq
    %v275 = vshrl.u32 %v274, 7
    %v276 = vsub.s32 3, %v275
    %v277 = vrot.slane %v261, %v276
    %vm278 = vcmp.eq.s32.totalorder %v265, 1
    %vm279 = vcmp.eq.s32.totalorder %v269, 1
    %vm280 = vcmp.eq.s32.totalorder %v273, 1
    %vm281 = vcmp.eq.s32.totalorder %v277, 1
    %v282 = vsel %vm278, %v255, -1e+30
    %v283 = vsel %vm279, %v256, -1e+30
    %v284 = vsel %vm280, %v257, -1e+30
    %v285 = vsel %vm281, %v258, -1e+30
    %v290 = vcombine.low %v282, %v283
    %v291 = vcombine.low %v284, %v285
    %294 = vst [vmem:[#allocation11] sm:$0xff] %v290
    %295 = vst [vmem:[#allocation11 + $0x8] sm:$0xff] %v291
    %v296 = vlaneseq
    %v297 = vshrl.u32 %v296, 7
    %v298 = vlaneseq
    %v299 = vshrl.u32 %v298, 7
    %v300 = vsub.s32 0, %v299
    %v301 = vrot.slane %v259, %v300
    %v302 = vlaneseq
    %v303 = vshrl.u32 %v302, 7
    %v304 = vsub.s32 1, %v303
    %v305 = vrot.slane %v259, %v304
    %v306 = vlaneseq
    %v307 = vshrl.u32 %v306, 7
    %v308 = vsub.s32 2, %v307
    %v309 = vrot.slane %v259, %v308
    %v310 = vlaneseq
    %v311 = vshrl.u32 %v310, 7
    %v312 = vsub.s32 3, %v311
    %v313 = vrot.slane %v259, %v312
    %vm314 = vcmp.eq.s32.totalorder %v297, %v301
    %vm315 = vcmp.eq.s32.totalorder %v297, %v305
    %vm316 = vcmp.eq.s32.totalorder %v297, %v309
    %vm317 = vcmp.eq.s32.totalorder %v297, %v313
    %v318 = vsel %vm314, 1, 0
    %v319 = vsel %vm315, 1, 0
    %v320 = vsel %vm316, 1, 0
    %v321 = vsel %vm317, 1, 0
    %v322 = vcvt.s32.f32 %v318
    %v323 = vcvt.s32.f32 %v319
    %v324 = vcvt.s32.f32 %v320
    %v325 = vcvt.s32.f32 %v321
    %v326 = vsub.f32 %v322, 1.0
    %v327 = vsub.f32 %v323, 1.0
    %v328 = vsub.f32 %v324, 1.0
    %v329 = vsub.f32 %v325, 1.0
    %v330 = vmul.f32 %v326, 1e+30
    %v331 = vmul.f32 %v327, 1e+30
    %v332 = vmul.f32 %v328, 1e+30
    %v333 = vmul.f32 %v329, 1e+30
    %v334 = vld [vmem:[#allocation2] sm:$0xff]
    %v335 = vld [vmem:[#allocation3] sm:$0xff]
    %v336 = vlaneseq
    %v337 = vshrl.u32 %v336, 7
    %v338 = vsub.s32 0, %v337
    %v339 = vrot.slane %v282, %v338
    %v340 = vlaneseq
    %v341 = vshrl.u32 %v340, 7
    %v342 = vsub.s32 0, %v341
    %v343 = vrot.slane %v283, %v342
    %v344 = vlaneseq
    %v345 = vshrl.u32 %v344, 7
    %v346 = vsub.s32 0, %v345
    %v347 = vrot.slane %v284, %v346
    %v348 = vlaneseq
    %v349 = vshrl.u32 %v348, 7
    %v350 = vsub.s32 0, %v349
    %v351 = vrot.slane %v285, %v350
    %v352 = vadd.f32 %v339, %v330
    %v353 = vadd.f32 %v343, %v331
    %v354 = vadd.f32 %v347, %v332
    %v355 = vadd.f32 %v351, %v333
    %v356 = vmax.f32 %v352, %v353
    %v357 = vmax.f32 %v354, %v355
    %v358 = vmax.f32 %v356, %v357
    %359 = vmax.xlane.f32.xlu0 %v358
    %v360 = vpop.xlane.xlu0 %359
    %v361 = vlaneseq
    %v362 = vshrl.u32 %v361, 7
    %v363 = vsub.s32 1, %v362
    %v364 = vrot.slane %v282, %v363
    %v365 = vlaneseq
    %v366 = vshrl.u32 %v365, 7
    %v367 = vsub.s32 1, %v366
    %v368 = vrot.slane %v283, %v367
    %v369 = vlaneseq
    %v370 = vshrl.u32 %v369, 7
    %v371 = vsub.s32 1, %v370
    %v372 = vrot.slane %v284, %v371
    %v373 = vlaneseq
    %v374 = vshrl.u32 %v373, 7
    %v375 = vsub.s32 1, %v374
    %v376 = vrot.slane %v285, %v375
    %v377 = vadd.f32 %v364, %v330
    %v378 = vadd.f32 %v368, %v331
    %v379 = vadd.f32 %v372, %v332
    %v380 = vadd.f32 %v376, %v333
    %v381 = vmax.f32 %v377, %v378
    %v382 = vmax.f32 %v379, %v380
    %v383 = vmax.f32 %v381, %v382
    %384 = vmax.xlane.f32.xlu0 %v383
    %v385 = vpop.xlane.xlu0 %384
    %v386 = vlaneseq
    %v387 = vshrl.u32 %v386, 7
    %v388 = vsub.s32 2, %v387
    %v389 = vrot.slane %v282, %v388
    %v390 = vlaneseq
    %v391 = vshrl.u32 %v390, 7
    %v392 = vsub.s32 2, %v391
    %v393 = vrot.slane %v283, %v392
    %v394 = vlaneseq
    %v395 = vshrl.u32 %v394, 7
    %v396 = vsub.s32 2, %v395
    %v397 = vrot.slane %v284, %v396
    %v398 = vlaneseq
    %v399 = vshrl.u32 %v398, 7
    %v400 = vsub.s32 2, %v399
    %v401 = vrot.slane %v285, %v400
    %v402 = vadd.f32 %v389, %v330
    %v403 = vadd.f32 %v393, %v331
    %v404 = vadd.f32 %v397, %v332
    %v405 = vadd.f32 %v401, %v333
    %v406 = vmax.f32 %v402, %v403
    %v407 = vmax.f32 %v404, %v405
    %v408 = vmax.f32 %v406, %v407
    %409 = vmax.xlane.f32.xlu0 %v408
    %v410 = vpop.xlane.xlu0 %409
    %v411 = vlaneseq
    %v412 = vshrl.u32 %v411, 7
    %v413 = vsub.s32 3, %v412
    %v414 = vrot.slane %v282, %v413
    %v415 = vlaneseq
    %v416 = vshrl.u32 %v415, 7
    %v417 = vsub.s32 3, %v416
    %v418 = vrot.slane %v283, %v417
    %v419 = vlaneseq
    %v420 = vshrl.u32 %v419, 7
    %v421 = vsub.s32 3, %v420
    %v422 = vrot.slane %v284, %v421
    %v423 = vlaneseq
    %v424 = vshrl.u32 %v423, 7
    %v425 = vsub.s32 3, %v424
    %v426 = vrot.slane %v285, %v425
    %v427 = vadd.f32 %v414, %v330
    %v428 = vadd.f32 %v418, %v331
    %v429 = vadd.f32 %v422, %v332
    %v430 = vadd.f32 %v426, %v333
    %v431 = vmax.f32 %v427, %v428
    %v432 = vmax.f32 %v429, %v430
    %v433 = vmax.f32 %v431, %v432
    %434 = vmax.xlane.f32.xlu0 %v433
    %v435 = vpop.xlane.xlu0 %434
    %vm436 = vcmask 7168
    %v437 = vsel %vm436, %v360, %v385
    %vm438 = vcmask 15360
    %v439 = vsel %vm438, %v437, %v410
    %vm440 = vcmask 23552
    %v441 = vsel %vm440, %v439, %v435
    %v442 = vmax.f32 %v334, %v441
    %443 = vxpose.xlu0.b32.start [1/16] %v442, 128
    %444 = vxpose.xlu0.b32.cont [2/16] 0.0, 128
    %445 = vxpose.xlu0.b32.cont [3/16] 0.0, 128
    %446 = vxpose.xlu0.b32.cont [4/16] 0.0, 128
    %447 = vxpose.xlu0.b32.cont [5/16] 0.0, 128
    %448 = vxpose.xlu0.b32.cont [6/16] 0.0, 128
    %449 = vxpose.xlu0.b32.cont [7/16] 0.0, 128
    %450 = vxpose.xlu0.b32.cont [8/16] 0.0, 128
    %451 = vxpose.xlu0.b32.cont [9/16] 0.0, 128
    %452 = vxpose.xlu0.b32.cont [10/16] 0.0, 128
    %453 = vxpose.xlu0.b32.cont [11/16] 0.0, 128
    %454 = vxpose.xlu0.b32.cont [12/16] 0.0, 128
    %455 = vxpose.xlu0.b32.cont [13/16] 0.0, 128
    %456 = vxpose.xlu0.b32.cont [14/16] 0.0, 128
    %457 = vxpose.xlu0.b32.cont [15/16] 0.0, 128
    %458 = vxpose.xlu0.b32.end [16/16] 0.0, 128
    %v459 = vpop.trf.xlu0
    %v460 = vpop.trf.xlu0
    %v461 = vpop.trf.xlu0
    %v462 = vpop.trf.xlu0
    %v463 = vpop.trf.xlu0
    %v464 = vpop.trf.xlu0
    %v465 = vpop.trf.xlu0
    %v466 = vpop.trf.xlu0
    %v467 = vpop.trf.xlu0
    %v468 = vpop.trf.xlu0
    %v469 = vpop.trf.xlu0
    %v470 = vpop.trf.xlu0
    %v471 = vpop.trf.xlu0
    %v472 = vpop.trf.xlu0
    %v473 = vpop.trf.xlu0
    %v474 = vpop.trf.xlu0
    %vm475 = vcmask 64512
    %v477 = vsel %vm475, %v459, 0
    %479 = vmatprep.subr.mxu0 0.0
    %480 = vmatpush1.msra.mxu0 0.0
    %481 = vmatprep.subr.mxu0 0.0
    %482 = vmatpush1.msra.mxu0 0.0
    %483 = vmatprep.subr.mxu0 0.0
    %484 = vmatpush1.msra.mxu0 0.0
    %485 = vmatprep.subr.mxu0 0.0
    %486 = vmatpush1.msra.mxu0 0.0
    %487 = vmatprep.subr.mxu0 0.0
    %488 = vmatpush1.msra.mxu0 0.0
    %489 = vmatprep.subr.mxu0 0.0
    %490 = vmatpush1.msra.mxu0 0.0
    %491 = vmatprep.subr.mxu0 0.0
    %492 = vmatpush1.msra.mxu0 0.0
    %493 = vmatprep.subr.mxu0 0.0
    %494 = vmatpush1.msra.mxu0 0.0
    %495 = vmatprep.subr.mxu0 0.0
    %496 = vmatpush1.msra.mxu0 0.0
    %497 = vmatprep.subr.mxu0 0.0
    %498 = vmatpush1.msra.mxu0 0.0
    %499 = vmatprep.subr.mxu0 0.0
    %500 = vmatpush1.msra.mxu0 0.0
    %501 = vmatprep.subr.mxu0 0.0
    %502 = vmatpush1.msra.mxu0 0.0
    %503 = vmatprep.subr.mxu0 0.0
    %504 = vmatpush1.msra.mxu0 0.0
    %505 = vmatprep.subr.mxu0 0.0
    %506 = vmatpush1.msra.mxu0 0.0
    %507 = vmatprep.subr.mxu0 0.0
    %508 = vmatpush1.msra.mxu0 0.0
    %509 = vmatprep.subr.mxu0 %v323
    %510 = vmatpush1.msra.mxu0 %v322
    %511 = vmatprep.subr.mxu0 0.0
    %512 = vmatpush2.msra.mxu0 0.0
    %513 = vmatprep.subr.mxu0 0.0
    %514 = vmatpush2.msra.mxu0 0.0
    %515 = vmatprep.subr.mxu0 0.0
    %516 = vmatpush2.msra.mxu0 0.0
    %517 = vmatprep.subr.mxu0 0.0
    %518 = vmatpush2.msra.mxu0 0.0
    %519 = vmatprep.subr.mxu0 0.0
    %520 = vmatpush2.msra.mxu0 0.0
    %521 = vmatprep.subr.mxu0 0.0
    %522 = vmatpush2.msra.mxu0 0.0
    %523 = vmatprep.subr.mxu0 0.0
    %524 = vmatpush2.msra.mxu0 0.0
    %525 = vmatprep.subr.mxu0 0.0
    %526 = vmatpush2.msra.mxu0 0.0
    %527 = vmatprep.subr.mxu0 0.0
    %528 = vmatpush2.msra.mxu0 0.0
    %529 = vmatprep.subr.mxu0 0.0
    %530 = vmatpush2.msra.mxu0 0.0
    %531 = vmatprep.subr.mxu0 0.0
    %532 = vmatpush2.msra.mxu0 0.0
    %533 = vmatprep.subr.mxu0 0.0
    %534 = vmatpush2.msra.mxu0 0.0
    %535 = vmatprep.subr.mxu0 0.0
    %536 = vmatpush2.msra.mxu0 0.0
    %537 = vmatprep.subr.mxu0 0.0
    %538 = vmatpush2.msra.mxu0 0.0
    %539 = vmatprep.subr.mxu0 0.0
    %540 = vmatpush2.msra.mxu0 0.0
    %541 = vmatprep.subr.mxu0 0.0
    %542 = vmatpush2.msra.mxu0 0.0
    %543 = vmatprep.mubr.f32.mxu0 0.0
    %544 = vmatmul.mubr.f32.gmra.mxu0 %v477
    %v545 = vpop.f32.mrf.mxu0
    %v546 = vadd.f32 0.0, %v545
    %v547 = vpop.f32.mrf.mxu0
    %v548 = vadd.f32 0.0, %v547
    %549 = vdwg.mxu0
    %550 = vmatprep.subr.mxu0 0.0
    %551 = vmatpush1.msra.mxu0 0.0
    %552 = vmatprep.subr.mxu0 0.0
    %553 = vmatpush1.msra.mxu0 0.0
    %554 = vmatprep.subr.mxu0 0.0
    %555 = vmatpush1.msra.mxu0 0.0
    %556 = vmatprep.subr.mxu0 0.0
    %557 = vmatpush1.msra.mxu0 0.0
    %558 = vmatprep.subr.mxu0 0.0
    %559 = vmatpush1.msra.mxu0 0.0
    %560 = vmatprep.subr.mxu0 0.0
    %561 = vmatpush1.msra.mxu0 0.0
    %562 = vmatprep.subr.mxu0 0.0
    %563 = vmatpush1.msra.mxu0 0.0
    %564 = vmatprep.subr.mxu0 0.0
    %565 = vmatpush1.msra.mxu0 0.0
    %566 = vmatprep.subr.mxu0 0.0
    %567 = vmatpush1.msra.mxu0 0.0
    %568 = vmatprep.subr.mxu0 0.0
    %569 = vmatpush1.msra.mxu0 0.0
    %570 = vmatprep.subr.mxu0 0.0
    %571 = vmatpush1.msra.mxu0 0.0
    %572 = vmatprep.subr.mxu0 0.0
    %573 = vmatpush1.msra.mxu0 0.0
    %574 = vmatprep.subr.mxu0 0.0
    %575 = vmatpush1.msra.mxu0 0.0
    %576 = vmatprep.subr.mxu0 0.0
    %577 = vmatpush1.msra.mxu0 0.0
    %578 = vmatprep.subr.mxu0 0.0
    %579 = vmatpush1.msra.mxu0 0.0
    %580 = vmatprep.subr.mxu0 %v325
    %581 = vmatpush1.msra.mxu0 %v324
    %582 = vmatprep.subr.mxu0 0.0
    %583 = vmatpush2.msra.mxu0 0.0
    %584 = vmatprep.subr.mxu0 0.0
    %585 = vmatpush2.msra.mxu0 0.0
    %586 = vmatprep.subr.mxu0 0.0
    %587 = vmatpush2.msra.mxu0 0.0
    %588 = vmatprep.subr.mxu0 0.0
    %589 = vmatpush2.msra.mxu0 0.0
    %590 = vmatprep.subr.mxu0 0.0
    %591 = vmatpush2.msra.mxu0 0.0
    %592 = vmatprep.subr.mxu0 0.0
    %593 = vmatpush2.msra.mxu0 0.0
    %594 = vmatprep.subr.mxu0 0.0
    %595 = vmatpush2.msra.mxu0 0.0
    %596 = vmatprep.subr.mxu0 0.0
    %597 = vmatpush2.msra.mxu0 0.0
    %598 = vmatprep.subr.mxu0 0.0
    %599 = vmatpush2.msra.mxu0 0.0
    %600 = vmatprep.subr.mxu0 0.0
    %601 = vmatpush2.msra.mxu0 0.0
    %602 = vmatprep.subr.mxu0 0.0
    %603 = vmatpush2.msra.mxu0 0.0
    %604 = vmatprep.subr.mxu0 0.0
    %605 = vmatpush2.msra.mxu0 0.0
    %606 = vmatprep.subr.mxu0 0.0
    %607 = vmatpush2.msra.mxu0 0.0
    %608 = vmatprep.subr.mxu0 0.0
    %609 = vmatpush2.msra.mxu0 0.0
    %610 = vmatprep.subr.mxu0 0.0
    %611 = vmatpush2.msra.mxu0 0.0
    %612 = vmatprep.subr.mxu0 0.0
    %613 = vmatpush2.msra.mxu0 0.0
    %614 = vmatprep.mubr.f32.mxu0 0.0
    %615 = vmatmul.mubr.f32.gmra.mxu0 %v477
    %v616 = vpop.f32.mrf.mxu0
    %v617 = vadd.f32 0.0, %v616
    %v618 = vpop.f32.mrf.mxu0
    %v619 = vadd.f32 0.0, %v618
    %620 = vdwg.mxu0
    %v621 = vsub.f32 %v282, %v546
    %v622 = vsub.f32 %v283, %v548
    %v623 = vsub.f32 %v284, %v617
    %v624 = vsub.f32 %v285, %v619
    %v625 = vmul.f32 %v621, 1.442695
    %v626 = vpow.pop %v625
    %v627 = vmul.f32 %v622, 1.442695
    %v628 = vpow.pop %v627
    %v629 = vmul.f32 %v623, 1.442695
    %v630 = vpow.pop %v629
    %v631 = vmul.f32 %v624, 1.442695
    %v632 = vpow.pop %v631
    %633 = vmatprep.subr.mxu0 0.0
    %634 = vmatpush1.xpose.msra.mxu0 0.0
    %635 = vmatprep.subr.mxu0 0.0
    %636 = vmatpush1.xpose.msra.mxu0 0.0
    %637 = vmatprep.subr.mxu0 0.0
    %638 = vmatpush1.xpose.msra.mxu0 0.0
    %639 = vmatprep.subr.mxu0 0.0
    %640 = vmatpush1.xpose.msra.mxu0 0.0
    %641 = vmatprep.subr.mxu0 0.0
    %642 = vmatpush1.xpose.msra.mxu0 0.0
    %643 = vmatprep.subr.mxu0 0.0
    %644 = vmatpush1.xpose.msra.mxu0 0.0
    %645 = vmatprep.subr.mxu0 0.0
    %646 = vmatpush1.xpose.msra.mxu0 0.0
    %647 = vmatprep.subr.mxu0 0.0
    %648 = vmatpush1.xpose.msra.mxu0 0.0
    %649 = vmatprep.subr.mxu0 0.0
    %650 = vmatpush1.xpose.msra.mxu0 0.0
    %651 = vmatprep.subr.mxu0 0.0
    %652 = vmatpush1.xpose.msra.mxu0 0.0
    %653 = vmatprep.subr.mxu0 0.0
    %654 = vmatpush1.xpose.msra.mxu0 0.0
    %655 = vmatprep.subr.mxu0 0.0
    %656 = vmatpush1.xpose.msra.mxu0 0.0
    %657 = vmatprep.subr.mxu0 0.0
    %658 = vmatpush1.xpose.msra.mxu0 0.0
    %659 = vmatprep.subr.mxu0 0.0
    %660 = vmatpush1.xpose.msra.mxu0 0.0
    %661 = vmatprep.subr.mxu0 0.0
    %662 = vmatpush1.xpose.msra.mxu0 0.0
    %663 = vmatprep.subr.mxu0 %v628
    %664 = vmatpush1.xpose.msra.mxu0 %v626
    %665 = vmatprep.subr.mxu0 0.0
    %666 = vmatpush2.xpose.msra.mxu0 0.0
    %667 = vmatprep.subr.mxu0 0.0
    %668 = vmatpush2.xpose.msra.mxu0 0.0
    %669 = vmatprep.subr.mxu0 0.0
    %670 = vmatpush2.xpose.msra.mxu0 0.0
    %671 = vmatprep.subr.mxu0 0.0
    %672 = vmatpush2.xpose.msra.mxu0 0.0
    %673 = vmatprep.subr.mxu0 0.0
    %674 = vmatpush2.xpose.msra.mxu0 0.0
    %675 = vmatprep.subr.mxu0 0.0
    %676 = vmatpush2.xpose.msra.mxu0 0.0
    %677 = vmatprep.subr.mxu0 0.0
    %678 = vmatpush2.xpose.msra.mxu0 0.0
    %679 = vmatprep.subr.mxu0 0.0
    %680 = vmatpush2.xpose.msra.mxu0 0.0
    %681 = vmatprep.subr.mxu0 0.0
    %682 = vmatpush2.xpose.msra.mxu0 0.0
    %683 = vmatprep.subr.mxu0 0.0
    %684 = vmatpush2.xpose.msra.mxu0 0.0
    %685 = vmatprep.subr.mxu0 0.0
    %686 = vmatpush2.xpose.msra.mxu0 0.0
    %687 = vmatprep.subr.mxu0 0.0
    %688 = vmatpush2.xpose.msra.mxu0 0.0
    %689 = vmatprep.subr.mxu0 0.0
    %690 = vmatpush2.xpose.msra.mxu0 0.0
    %691 = vmatprep.subr.mxu0 0.0
    %692 = vmatpush2.xpose.msra.mxu0 0.0
    %693 = vmatprep.subr.mxu0 0.0
    %694 = vmatpush2.xpose.msra.mxu0 0.0
    %695 = vmatprep.subr.mxu0 0.0
    %696 = vmatpush2.xpose.msra.mxu0 0.0
    %697 = vmatprep.mubr.f32.mxu0 %v323
    %698 = vmatmul.mubr.f32.gmra.mxu0 %v322
    %v699 = vpop.f32.mrf.mxu0
    %v700 = vadd.f32 0.0, %v699
    %v701 = vpop.f32.mrf.mxu0
    %702 = vdwg.mxu0
    %703 = vmatprep.subr.mxu0 0.0
    %704 = vmatpush1.xpose.msra.mxu0 0.0
    %705 = vmatprep.subr.mxu0 0.0
    %706 = vmatpush1.xpose.msra.mxu0 0.0
    %707 = vmatprep.subr.mxu0 0.0
    %708 = vmatpush1.xpose.msra.mxu0 0.0
    %709 = vmatprep.subr.mxu0 0.0
    %710 = vmatpush1.xpose.msra.mxu0 0.0
    %711 = vmatprep.subr.mxu0 0.0
    %712 = vmatpush1.xpose.msra.mxu0 0.0
    %713 = vmatprep.subr.mxu0 0.0
    %714 = vmatpush1.xpose.msra.mxu0 0.0
    %715 = vmatprep.subr.mxu0 0.0
    %716 = vmatpush1.xpose.msra.mxu0 0.0
    %717 = vmatprep.subr.mxu0 0.0
    %718 = vmatpush1.xpose.msra.mxu0 0.0
    %719 = vmatprep.subr.mxu0 0.0
    %720 = vmatpush1.xpose.msra.mxu0 0.0
    %721 = vmatprep.subr.mxu0 0.0
    %722 = vmatpush1.xpose.msra.mxu0 0.0
    %723 = vmatprep.subr.mxu0 0.0
    %724 = vmatpush1.xpose.msra.mxu0 0.0
    %725 = vmatprep.subr.mxu0 0.0
    %726 = vmatpush1.xpose.msra.mxu0 0.0
    %727 = vmatprep.subr.mxu0 0.0
    %728 = vmatpush1.xpose.msra.mxu0 0.0
    %729 = vmatprep.subr.mxu0 0.0
    %730 = vmatpush1.xpose.msra.mxu0 0.0
    %731 = vmatprep.subr.mxu0 0.0
    %732 = vmatpush1.xpose.msra.mxu0 0.0
    %733 = vmatprep.subr.mxu0 %v632
    %734 = vmatpush1.xpose.msra.mxu0 %v630
    %735 = vmatprep.subr.mxu0 0.0
    %736 = vmatpush2.xpose.msra.mxu0 0.0
    %737 = vmatprep.subr.mxu0 0.0
    %738 = vmatpush2.xpose.msra.mxu0 0.0
    %739 = vmatprep.subr.mxu0 0.0
    %740 = vmatpush2.xpose.msra.mxu0 0.0
    %741 = vmatprep.subr.mxu0 0.0
    %742 = vmatpush2.xpose.msra.mxu0 0.0
    %743 = vmatprep.subr.mxu0 0.0
    %744 = vmatpush2.xpose.msra.mxu0 0.0
    %745 = vmatprep.subr.mxu0 0.0
    %746 = vmatpush2.xpose.msra.mxu0 0.0
    %747 = vmatprep.subr.mxu0 0.0
    %748 = vmatpush2.xpose.msra.mxu0 0.0
    %749 = vmatprep.subr.mxu0 0.0
    %750 = vmatpush2.xpose.msra.mxu0 0.0
    %751 = vmatprep.subr.mxu0 0.0
    %752 = vmatpush2.xpose.msra.mxu0 0.0
    %753 = vmatprep.subr.mxu0 0.0
    %754 = vmatpush2.xpose.msra.mxu0 0.0
    %755 = vmatprep.subr.mxu0 0.0
    %756 = vmatpush2.xpose.msra.mxu0 0.0
    %757 = vmatprep.subr.mxu0 0.0
    %758 = vmatpush2.xpose.msra.mxu0 0.0
    %759 = vmatprep.subr.mxu0 0.0
    %760 = vmatpush2.xpose.msra.mxu0 0.0
    %761 = vmatprep.subr.mxu0 0.0
    %762 = vmatpush2.xpose.msra.mxu0 0.0
    %763 = vmatprep.subr.mxu0 0.0
    %764 = vmatpush2.xpose.msra.mxu0 0.0
    %765 = vmatprep.subr.mxu0 0.0
    %766 = vmatpush2.xpose.msra.mxu0 0.0
    %767 = vmatprep.mubr.f32.mxu0 %v325
    %768 = vmatmul.mubr.f32.gmra.mxu0 %v324
    %v769 = vpop.f32.mrf.mxu0
    %v770 = vadd.f32 %v700, %v769
    %v771 = vpop.f32.mrf.mxu0
    %772 = vdwg.mxu0
    %vm773 = vcmask 31744
    %774 = vst.msk [vmem:[#allocation2] sm:$0xff] %vm773, %v442
    %v775 = vsub.f32 %v334, %v442
    %v776 = vmul.f32 %v775, 1.442695
    %v777 = vpow.pop %v776
    %v778 = vmul.f32 %v335, %v777
    %v779 = vadd.f32 %v778, %v770
    %780 = vst.msk [vmem:[#allocation3] sm:$0xff] %vm773, %v779
    // Predicated region
    $region30: #{tpu_custom_call.1} parent=1 // pred_check
      %p781 = pneg %p69
    $region31: #{tpu_custom_call.1} parent=1 // pred_check_branch
      %783 = sbr.rel (%p781) target = $region33
    $region32: #{tpu_custom_call.1} parent=1 // pred_region
      %v784 = vld [vmem:[#allocation2] sm:$0xff]
      %v785 = vld [vmem:[#allocation3] sm:$0xff]
      %787 = vrot.lane.b32.xlu0 %v785, 4
      %v788 = vpop.permute.xlu0 %787
      %v790 = vsel %vm773, %v784, %v788
      %791 = vst.msk [vmem:[#allocation10] sm:$0xff] %vm475, %v790
    $region33: #{tpu_custom_call.1} parent=1 // pred_fallthru
      _
    // Predicated region
    $region34: #{tpu_custom_call.1} parent=1 // pred_check
      _
    $region35: #{tpu_custom_call.1} parent=1 // pred_check_branch
      %793 = sbr.rel (0) target = $region37
    $region36: #{tpu_custom_call.1} parent=1 // pred_region
      %s795 = ssub.s32 128, 128
      %796 = vsyncadd [#allocation6], %s795
      %s798 = sshll.u32 [#allocation10], 4
      %s799 = int_to_ptr.vmem [resolvable:$true] %s798
      %801 = dma.vmem_to_hbm [thread:$0]  %s799, 128, %s3, [#allocation6]
    $region37: #{tpu_custom_call.1} parent=1 // pred_fallthru
      _
    // Predicated region
    $region38: #{tpu_custom_call.1} parent=1 // pred_check
      _
    $region39: #{tpu_custom_call.1} parent=1 // pred_check_branch
      %803 = sbr.rel (0) target = $region41
    $region40: #{tpu_custom_call.1} parent=1 // pred_region
      %s804 = sadd.s32 0, 0
      %s805 = smul.u32 4, %s804
      %s807 = ssub.s32 256, 256
      %808 = vsyncadd [#allocation12], %s807
      %s809 = smul.addr %s805, 64
      %s810 = scalar_lea.hbm %s4, %s809
      %s812 = sshll.u32 [#allocation11], 4
      %s813 = int_to_ptr.vmem [resolvable:$true] %s812
      %815 = dma.vmem_to_hbm [thread:$0]  %s813, 256, %s810, [#allocation12]
    $region41: #{tpu_custom_call.1} parent=1 // pred_fallthru
      _
    // Predicated region
    $region42: #{tpu_custom_call.1} parent=1 // pred_check
      _
    $region43: #{tpu_custom_call.1} parent=1 // pred_check_branch
      %817 = sbr.rel (0) target = $region45
    $region44: #{tpu_custom_call.1} parent=1 // pred_region
      %818 = dma.done [#allocation6], 128
    $region45: #{tpu_custom_call.1} parent=1 // pred_fallthru
      _
    // Predicated region
    $region46: #{tpu_custom_call.1} parent=1 // pred_check
      _
    $region47: #{tpu_custom_call.1} parent=1 // pred_check_branch
      %820 = sbr.rel (0) target = $region49
    $region48: #{tpu_custom_call.1} parent=1 // pred_region
      %821 = dma.done [#allocation12], 256
    $region49: #{tpu_custom_call.1} parent=1 // pred_fallthru
      _
    %822 = vsyncpa [#allocation5], 1
    %823 = vsyncpa [#allocation8], 1
    %824 = vsyncpa [#allocation6], 1
    %825 = vsyncpa [#allocation12], 1

</llo_original>
